<compile_context>
chip_gen: v7x
topology: tpu7x:2x2x1
jax: 0.10.0
libtpu: 0.0.40
codegen_flags: <defaults>
</compile_context>

<pallas_src>
import functools

import jax
import jax.numpy as jnp
from jax.experimental import pallas as pl
from jax.experimental.pallas import tpu as pltpu

NEG_SLOPE = 0.01   # F.leaky_relu default negative_slope
BN_EPS = 1e-5      # torch.nn.BatchNorm1d default eps


def _leaky(x):
    return jnp.where(x >= 0, x, NEG_SLOPE * x)


def _round_up(v, m):
    return ((v + m - 1) // m) * m


# ----------------------------------------------------------------------------
# Fused kernel: 3 x (GCNConv + BN + leaky + Linear(C->1) + leaky), then
# reshape(B,F) + Linear(F->1) + leaky, all in VMEM, lane-dense layout.
# ----------------------------------------------------------------------------
def make_net2_kernel(C, N):
    inv_n = 1.0 / N

    def kernel(x_ref, a_ref, p_ref, sw_ref, o_ref):
        """Shapes (per grid step g = one independent Net2 forward):
             x_ref : (1,1,N) node features as a lane-dense row
             a_ref : (N,N)   A_hat^T (bf16), resident across all grid steps
             p_ref : (3,Cr,8) packed per-stage params, column-oriented:
                       cols 0..4 (rows 0..C-1) = GCN W, GCN bias, BN gamma,
                                                 BN beta, lin1times weight
                       [0,5] = lin1times bias, [0,6] = lin1 bias (stage 0 only)
             sw_ref: (N,B)   transposed block-diag final-linear weight
             o_ref : (1,1,B) output row
        """
        a_t = a_ref[...]                                    # (N,N) bf16
        cur = x_ref[0]                                      # (1,N) f32 row
        lin1_b = None

        for s in range(3):                                  # unrolled in VMEM/vregs
            p_s = p_ref[s]                                  # (Cr, 8)
            w_col = p_s[0:C, 0:1]                           # (C,1) GCNConv weight
            b_col = p_s[0:C, 1:2]                           # (C,1) GCNConv bias
            g_col = p_s[0:C, 2:3]                           # (C,1) BN gamma
            beta_col = p_s[0:C, 3:4]                        # (C,1) BN beta
            lw_col = p_s[0:C, 4:5]                          # (C,1) lin1times weight
            lb = p_s[0:1, 5:6]                              # (1,1) lin1times bias
            if s == 0:
                # NOTE: only valid because this Python loop stays unrolled.
                lin1_b = p_s[0:1, 6:7]                      # (1,1) lin1 bias

            # GCNConv (in_channels == 1) with the weight folded into the MXU:
            #   h^T = (W^T x^T) @ A_hat^T + b     -> (C,N), lane-dense
            lhs = (w_col * cur).astype(a_t.dtype)           # (C,N) bf16 MXU operand
            h = jnp.dot(lhs, a_t, preferred_element_type=jnp.float32) + b_col

            # BatchNorm1d (training-mode batch stats, biased var): lane reduces
            mean = jnp.sum(h, axis=1, keepdims=True) * inv_n            # (C,1)
            e2 = jnp.sum(h * h, axis=1, keepdims=True) * inv_n          # (C,1)
            var = jnp.maximum(e2 - mean * mean, 0.0)                    # clamp
            scale = g_col * jax.lax.rsqrt(var + BN_EPS)                 # gamma folded
            shift = beta_col - mean * scale
            hb = _leaky(h * scale + shift)                              # (C,N)

            # lin1times{s}: Linear(C -> 1) == C-sublane reduce in this layout
            cur = _leaky(jnp.sum(hb * lw_col, axis=0, keepdims=True) + lb)  # (1,N)

        # reshape(B,F) + Linear(F -> 1) + leaky as one lane-dense matmul:
        #   out[b] = sum_f cur[b*F + f] * lin1_w[f] + lin1_b
        out = jnp.dot(cur, sw_ref[...], preferred_element_type=jnp.float32) + lin1_b
        o_ref[0] = _leaky(out)                                          # (1,B)

    return kernel


def net2_pallas(a_t, pstack, sw_t, x_rows, C):
    g_, _, n = x_rows.shape
    b = sw_t.shape[1]
    cr = pstack.shape[1]
    return pl.pallas_call(
        make_net2_kernel(C, n),
        out_shape=jax.ShapeDtypeStruct((g_, 1, b), jnp.float32),
        grid_spec=pltpu.PrefetchScalarGridSpec(
            num_scalar_prefetch=0,
            grid=(g_,),
            in_specs=[
                pl.BlockSpec((1, 1, n), lambda g: (g, 0, 0)),    # per-forward features
                pl.BlockSpec((n, n), lambda g: (0, 0)),          # A_hat^T (resident)
                pl.BlockSpec((3, cr, 8), lambda g: (0, 0, 0)),   # packed params
                pl.BlockSpec((n, b), lambda g: (0, 0)),          # final-linear weight^T
            ],
            out_specs=pl.BlockSpec((1, 1, b), lambda g: (g, 0, 0)),
        ),
        compiler_params=pltpu.CompilerParams(
            dimension_semantics=("parallel",),   # shard forwards across TCs (v7x)
        ),
    )(x_rows, a_t, pstack, sw_t)


# ----------------------------------------------------------------------------
# Host-side (hoisted) preparation: adjacency normalization, param packing,
# final-linear block-diagonal weight.  Built once, passed into the jitted call.
# ----------------------------------------------------------------------------
def build_gcn_adj_T(edge_index, n):
    """PyG gcn_norm with self-loops, returned TRANSPOSED (A_hat^T) and bf16."""
    row, col = edge_index[0], edge_index[1]          # (source, target)
    loop = jnp.arange(n, dtype=row.dtype)
    row = jnp.concatenate([row, loop])
    col = jnp.concatenate([col, loop])
    w = jnp.ones(row.shape[0], jnp.float32)
    deg = jnp.zeros((n,), jnp.float32).at[col].add(w)
    dinv = jnp.where(deg > 0, 1.0 / jnp.sqrt(deg), 0.0)
    norm = dinv[row] * w * dinv[col]
    # A_hat[target, source] += norm; transposed -> [source, target]
    a_t = jnp.zeros((n, n), jnp.float32).at[row, col].add(norm)
    # TODO(synk): for large N, tile A^T over a BlockSpec grid or exploit graph
    # sparsity (ring graph == 3-tap stencil via pltpu.roll) instead of dense A.
    return a_t.astype(jnp.bfloat16)                  # MXU operand only; VPU math stays f32


def pack_params(params, C):
    """Pack the 3 stages' tiny params column-wise into one (3, Cr, 8) slab."""
    cr = _round_up(C, 8)
    slabs = []
    for idx in range(3):
        p = params[f"g{idx + 1}"]
        slab = jnp.zeros((cr, 8), jnp.float32)
        slab = slab.at[0:C, 0].set(p["w"][0])
        slab = slab.at[0:C, 1].set(p["b"][0])
        slab = slab.at[0:C, 2].set(p["gamma"][0])
        slab = slab.at[0:C, 3].set(p["beta"][0])
        slab = slab.at[0:C, 4].set(p["lw"][0])
        slab = slab.at[0, 5].set(p["lb"][0, 0])
        if idx == 0:
            slab = slab.at[0, 6].set(params["lin1_b"][0, 0])
        slabs.append(slab)
    return jnp.stack(slabs, axis=0)                  # (3, Cr, 8)


def build_final_weight_T(lin1_w, batch_size, num_features):
    """sw_t[b*F + f, b] = lin1_w[f]  (block-diagonal Linear(F,1), transposed)."""
    return jnp.kron(jnp.eye(batch_size, dtype=jnp.float32),
                    lin1_w.reshape(num_features, 1))          # (N, B)


def prepare_net2(params, edge_index, n, batch_size, num_features):
    C = params["g1"]["w"].shape[1]
    a_t = build_gcn_adj_T(edge_index, n)
    pstack = pack_params(params, C)
    sw_t = build_final_weight_T(params["lin1_w"], batch_size, num_features)
    return a_t, pstack, sw_t, C


def net2_apply(a_t, pstack, sw_t, x_batch, C):
    """x_batch: (G, N, 1) — G independent Net2 forwards in one pallas_call.
    G == 1 reproduces a single torch Net2.forward (BN stats are per forward)."""
    g_, n, _ = x_batch.shape
    x_rows = x_batch.reshape(g_, 1, n)               # lane-dense row layout
    out = net2_pallas(a_t, pstack, sw_t, x_rows, C)  # (G, 1, B)
    return jnp.transpose(out, (0, 2, 1))             # (G, B, 1), torch-shaped


def init_params(key, num_features, out_channels):
    C = out_channels
    ks = jax.random.split(key, 16)
    params = {}
    for idx in range(3):
        k_w, k_b, k_lw, k_lb = ks[4 * idx: 4 * idx + 4]
        params[f"g{idx + 1}"] = dict(
            w=jax.random.normal(k_w, (1, C), jnp.float32) * 0.5,      # GCNConv weight (1 -> C)
            b=jax.random.normal(k_b, (1, C), jnp.float32) * 0.1,      # GCNConv bias
            gamma=jnp.ones((1, C), jnp.float32),                      # BatchNorm1d weight
            beta=jnp.zeros((1, C), jnp.float32),                      # BatchNorm1d bias
            lw=jax.random.normal(k_lw, (1, C), jnp.float32) * 0.5,    # lin1times{i} weight
            lb=jax.random.normal(k_lb, (1, 1), jnp.float32) * 0.1,    # lin1times{i} bias
        )
    params["lin1_w"] = jax.random.normal(ks[12], (1, num_features), jnp.float32) * 0.2
    params["lin1_b"] = jax.random.normal(ks[13], (1, 1), jnp.float32) * 0.1
    return params


# ----------------------------------------------------------------------------
if __name__ == "__main__":
    B, F_, C = 8, 16, 5          # batch, num_features, out_channels (Net2 default 5)
    N = B * F_                   # graph has B * num_features nodes (== 128)
    G = 2                        # independent forwards batched into one call

    key = jax.random.PRNGKey(0)
    k_x, k_p = jax.random.split(key)

    # node features for G independent forwards: (G, N, 1)  (GCNConv in_channels == 1)
    x = jax.random.normal(k_x, (G, N, 1), jnp.float32)

    # deterministic ring graph: edges i -> i+1 and i+1 -> i  => edge_index (2, 2N)
    src = jnp.arange(N, dtype=jnp.int32)
    dst = (src + 1) % N
    edge_index = jnp.stack([jnp.concatenate([src, dst]),
                            jnp.concatenate([dst, src])], axis=0)

    params = init_params(k_p, F_, C)

    # Hoisted off the per-call path: built once, passed as plain device arrays.
    a_t, pstack, sw_t, C_ = prepare_net2(params, edge_index, N, B, F_)

    fwd = jax.jit(functools.partial(net2_apply, C=C_))
    out = fwd(a_t, pstack, sw_t, x)
    jax.block_until_ready(out)

    assert out.shape == (G, B, 1) and out.dtype == jnp.float32
    assert bool(jnp.all(jnp.isfinite(out)))
    print("KERNEL_OK")
</pallas_src>

<mosaic_0001>
module attributes {stable_mosaic.version = 11 : i64} {
  func.func @kernel(%arg0: i32, %arg1: memref<1x1x128xf32, #tpu.memory_space<vmem>>, %arg2: memref<128x128xbf16, #tpu.memory_space<vmem>>, %arg3: memref<3x8x8xf32, #tpu.memory_space<vmem>>, %arg4: memref<128x8xf32, #tpu.memory_space<vmem>>, %arg5: memref<1x1x8xf32, #tpu.memory_space<vmem>>) attributes {dimension_semantics = [#tpu.dimension_semantics<parallel>], iteration_bounds = array<i64: 2>, scalar_prefetch = 0 : i64, scratch_operands = 0 : i64, tpu.core_type = #tpu.core_type<tc>, window_params = [{transform_indices = @transform_0, window_bounds = array<i64: 1, 1, 128>}, {pipeline_mode = #tpu.pipeline_mode<synchronous>, transform_indices = @transform_1, window_bounds = array<i64: 128, 128>}, {pipeline_mode = #tpu.pipeline_mode<synchronous>, transform_indices = @transform_2, window_bounds = array<i64: 3, 8, 8>}, {pipeline_mode = #tpu.pipeline_mode<synchronous>, transform_indices = @transform_3, window_bounds = array<i64: 128, 8>}, {transform_indices = @transform_4, window_bounds = array<i64: 1, 1, 8>}]} {
    %c0 = arith.constant 0 : index
    %c0_0 = arith.constant 0 : index
    %0 = vector.load %arg2[%c0, %c0_0] : memref<128x128xbf16, #tpu.memory_space<vmem>>, vector<128x128xbf16>
    %c0_1 = arith.constant 0 : index
    %c0_2 = arith.constant 0 : index
    %c0_3 = arith.constant 0 : index
    %1 = vector.load %arg1[%c0_1, %c0_2, %c0_3] : memref<1x1x128xf32, #tpu.memory_space<vmem>>, vector<1x1x128xf32>
    %2 = vector.shape_cast %1 : vector<1x1x128xf32> to vector<1x128xf32>
    %c0_4 = arith.constant 0 : index
    %c0_5 = arith.constant 0 : index
    %c0_6 = arith.constant 0 : index
    %3 = vector.load %arg3[%c0_4, %c0_5, %c0_6] : memref<3x8x8xf32, #tpu.memory_space<vmem>>, vector<1x8x8xf32>
    %4 = vector.shape_cast %3 : vector<1x8x8xf32> to vector<8x8xf32>
    %5 = vector.extract_strided_slice %4 {offsets = [0, 0], sizes = [5, 1], strides = [1, 1]} : vector<8x8xf32> to vector<5x1xf32>
    %6 = vector.extract_strided_slice %4 {offsets = [0, 1], sizes = [5, 1], strides = [1, 1]} : vector<8x8xf32> to vector<5x1xf32>
    %7 = vector.extract_strided_slice %4 {offsets = [0, 2], sizes = [5, 1], strides = [1, 1]} : vector<8x8xf32> to vector<5x1xf32>
    %8 = vector.extract_strided_slice %4 {offsets = [0, 3], sizes = [5, 1], strides = [1, 1]} : vector<8x8xf32> to vector<5x1xf32>
    %9 = vector.extract_strided_slice %4 {offsets = [0, 4], sizes = [5, 1], strides = [1, 1]} : vector<8x8xf32> to vector<5x1xf32>
    %10 = vector.extract_strided_slice %4 {offsets = [0, 5], sizes = [1, 1], strides = [1, 1]} : vector<8x8xf32> to vector<1x1xf32>
    %11 = vector.extract_strided_slice %4 {offsets = [0, 6], sizes = [1, 1], strides = [1, 1]} : vector<8x8xf32> to vector<1x1xf32>
    %12 = vector.broadcast %5 : vector<5x1xf32> to vector<5x128xf32>
    %13 = vector.broadcast %2 : vector<1x128xf32> to vector<5x128xf32>
    %14 = arith.mulf %12, %13 : vector<5x128xf32>
    %15 = arith.truncf %14 : vector<5x128xf32> to vector<5x128xbf16>
    %cst = arith.constant dense<0.000000e+00> : vector<5x128xf32>
    %16 = tpu.matmul %15, %0, %cst {dimension_numbers = #tpu.dot_dimension_numbers<[1], [0], [0], [1], [0, 0, 1, 1], [], []>} : vector<5x128xbf16>, vector<128x128xbf16>, vector<5x128xf32> -> vector<5x128xf32>
    %17 = vector.broadcast %6 : vector<5x1xf32> to vector<5x128xf32>
    %18 = arith.addf %16, %17 : vector<5x128xf32>
    %cst_7 = arith.constant dense<0.000000e+00> : vector<5xf32>
    %19 = vector.multi_reduction <add>, %18, %cst_7 [1] : vector<5x128xf32> to vector<5xf32>
    %20 = vector.shape_cast %19 : vector<5xf32> to vector<5x1xf32>
    %cst_8 = arith.constant 7.812500e-03 : f32
    %21 = vector.broadcast %cst_8 : f32 to vector<5x1xf32>
    %22 = arith.mulf %20, %21 : vector<5x1xf32>
    %23 = arith.mulf %18, %18 : vector<5x128xf32>
    %cst_9 = arith.constant dense<0.000000e+00> : vector<5xf32>
    %24 = vector.multi_reduction <add>, %23, %cst_9 [1] : vector<5x128xf32> to vector<5xf32>
    %25 = vector.shape_cast %24 : vector<5xf32> to vector<5x1xf32>
    %cst_10 = arith.constant 7.812500e-03 : f32
    %26 = vector.broadcast %cst_10 : f32 to vector<5x1xf32>
    %27 = arith.mulf %25, %26 : vector<5x1xf32>
    %28 = arith.mulf %22, %22 : vector<5x1xf32>
    %29 = arith.subf %27, %28 : vector<5x1xf32>
    %cst_11 = arith.constant 0.000000e+00 : f32
    %30 = vector.broadcast %cst_11 : f32 to vector<5x1xf32>
    %31 = arith.maximumf %29, %30 : vector<5x1xf32>
    %cst_12 = arith.constant 9.99999974E-6 : f32
    %32 = vector.broadcast %cst_12 : f32 to vector<5x1xf32>
    %33 = arith.addf %31, %32 : vector<5x1xf32>
    %34 = math.rsqrt %33 : vector<5x1xf32>
    %35 = arith.mulf %7, %34 : vector<5x1xf32>
    %36 = arith.mulf %22, %35 : vector<5x1xf32>
    %37 = arith.subf %8, %36 : vector<5x1xf32>
    %38 = vector.broadcast %35 : vector<5x1xf32> to vector<5x128xf32>
    %39 = arith.mulf %18, %38 : vector<5x128xf32>
    %40 = vector.broadcast %37 : vector<5x1xf32> to vector<5x128xf32>
    %41 = arith.addf %39, %40 : vector<5x128xf32>
    %cst_13 = arith.constant 0.000000e+00 : f32
    %42 = vector.broadcast %cst_13 : f32 to vector<5x128xf32>
    %43 = arith.cmpf oge, %41, %42 : vector<5x128xf32>
    %cst_14 = arith.constant 0.00999999977 : f32
    %44 = vector.broadcast %cst_14 : f32 to vector<5x128xf32>
    %45 = arith.mulf %44, %41 : vector<5x128xf32>
    %46 = arith.select %43, %41, %45 : vector<5x128xi1>, vector<5x128xf32>
    %47 = vector.broadcast %9 : vector<5x1xf32> to vector<5x128xf32>
    %48 = arith.mulf %46, %47 : vector<5x128xf32>
    %cst_15 = arith.constant dense<0.000000e+00> : vector<128xf32>
    %49 = vector.multi_reduction <add>, %48, %cst_15 [0] : vector<5x128xf32> to vector<128xf32>
    %50 = vector.shape_cast %49 : vector<128xf32> to vector<1x128xf32>
    %51 = vector.broadcast %10 : vector<1x1xf32> to vector<1x128xf32>
    %52 = arith.addf %50, %51 : vector<1x128xf32>
    %cst_16 = arith.constant 0.000000e+00 : f32
    %53 = vector.broadcast %cst_16 : f32 to vector<1x128xf32>
    %54 = arith.cmpf oge, %52, %53 : vector<1x128xf32>
    %cst_17 = arith.constant 0.00999999977 : f32
    %55 = vector.broadcast %cst_17 : f32 to vector<1x128xf32>
    %56 = arith.mulf %55, %52 : vector<1x128xf32>
    %57 = arith.select %54, %52, %56 : vector<1x128xi1>, vector<1x128xf32>
    %c1 = arith.constant 1 : index
    %c0_18 = arith.constant 0 : index
    %c0_19 = arith.constant 0 : index
    %58 = vector.load %arg3[%c1, %c0_18, %c0_19] : memref<3x8x8xf32, #tpu.memory_space<vmem>>, vector<1x8x8xf32>
    %59 = vector.shape_cast %58 : vector<1x8x8xf32> to vector<8x8xf32>
    %60 = vector.extract_strided_slice %59 {offsets = [0, 0], sizes = [5, 1], strides = [1, 1]} : vector<8x8xf32> to vector<5x1xf32>
    %61 = vector.extract_strided_slice %59 {offsets = [0, 1], sizes = [5, 1], strides = [1, 1]} : vector<8x8xf32> to vector<5x1xf32>
    %62 = vector.extract_strided_slice %59 {offsets = [0, 2], sizes = [5, 1], strides = [1, 1]} : vector<8x8xf32> to vector<5x1xf32>
    %63 = vector.extract_strided_slice %59 {offsets = [0, 3], sizes = [5, 1], strides = [1, 1]} : vector<8x8xf32> to vector<5x1xf32>
    %64 = vector.extract_strided_slice %59 {offsets = [0, 4], sizes = [5, 1], strides = [1, 1]} : vector<8x8xf32> to vector<5x1xf32>
    %65 = vector.extract_strided_slice %59 {offsets = [0, 5], sizes = [1, 1], strides = [1, 1]} : vector<8x8xf32> to vector<1x1xf32>
    %66 = vector.broadcast %60 : vector<5x1xf32> to vector<5x128xf32>
    %67 = vector.broadcast %57 : vector<1x128xf32> to vector<5x128xf32>
    %68 = arith.mulf %66, %67 : vector<5x128xf32>
    %69 = arith.truncf %68 : vector<5x128xf32> to vector<5x128xbf16>
    %cst_20 = arith.constant dense<0.000000e+00> : vector<5x128xf32>
    %70 = tpu.matmul %69, %0, %cst_20 {dimension_numbers = #tpu.dot_dimension_numbers<[1], [0], [0], [1], [0, 0, 1, 1], [], []>} : vector<5x128xbf16>, vector<128x128xbf16>, vector<5x128xf32> -> vector<5x128xf32>
    %71 = vector.broadcast %61 : vector<5x1xf32> to vector<5x128xf32>
    %72 = arith.addf %70, %71 : vector<5x128xf32>
    %cst_21 = arith.constant dense<0.000000e+00> : vector<5xf32>
    %73 = vector.multi_reduction <add>, %72, %cst_21 [1] : vector<5x128xf32> to vector<5xf32>
    %74 = vector.shape_cast %73 : vector<5xf32> to vector<5x1xf32>
    %cst_22 = arith.constant 7.812500e-03 : f32
    %75 = vector.broadcast %cst_22 : f32 to vector<5x1xf32>
    %76 = arith.mulf %74, %75 : vector<5x1xf32>
    %77 = arith.mulf %72, %72 : vector<5x128xf32>
    %cst_23 = arith.constant dense<0.000000e+00> : vector<5xf32>
    %78 = vector.multi_reduction <add>, %77, %cst_23 [1] : vector<5x128xf32> to vector<5xf32>
    %79 = vector.shape_cast %78 : vector<5xf32> to vector<5x1xf32>
    %cst_24 = arith.constant 7.812500e-03 : f32
    %80 = vector.broadcast %cst_24 : f32 to vector<5x1xf32>
    %81 = arith.mulf %79, %80 : vector<5x1xf32>
    %82 = arith.mulf %76, %76 : vector<5x1xf32>
    %83 = arith.subf %81, %82 : vector<5x1xf32>
    %cst_25 = arith.constant 0.000000e+00 : f32
    %84 = vector.broadcast %cst_25 : f32 to vector<5x1xf32>
    %85 = arith.maximumf %83, %84 : vector<5x1xf32>
    %cst_26 = arith.constant 9.99999974E-6 : f32
    %86 = vector.broadcast %cst_26 : f32 to vector<5x1xf32>
    %87 = arith.addf %85, %86 : vector<5x1xf32>
    %88 = math.rsqrt %87 : vector<5x1xf32>
    %89 = arith.mulf %62, %88 : vector<5x1xf32>
    %90 = arith.mulf %76, %89 : vector<5x1xf32>
    %91 = arith.subf %63, %90 : vector<5x1xf32>
    %92 = vector.broadcast %89 : vector<5x1xf32> to vector<5x128xf32>
    %93 = arith.mulf %72, %92 : vector<5x128xf32>
    %94 = vector.broadcast %91 : vector<5x1xf32> to vector<5x128xf32>
    %95 = arith.addf %93, %94 : vector<5x128xf32>
    %cst_27 = arith.constant 0.000000e+00 : f32
    %96 = vector.broadcast %cst_27 : f32 to vector<5x128xf32>
    %97 = arith.cmpf oge, %95, %96 : vector<5x128xf32>
    %cst_28 = arith.constant 0.00999999977 : f32
    %98 = vector.broadcast %cst_28 : f32 to vector<5x128xf32>
    %99 = arith.mulf %98, %95 : vector<5x128xf32>
    %100 = arith.select %97, %95, %99 : vector<5x128xi1>, vector<5x128xf32>
    %101 = vector.broadcast %64 : vector<5x1xf32> to vector<5x128xf32>
    %102 = arith.mulf %100, %101 : vector<5x128xf32>
    %cst_29 = arith.constant dense<0.000000e+00> : vector<128xf32>
    %103 = vector.multi_reduction <add>, %102, %cst_29 [0] : vector<5x128xf32> to vector<128xf32>
    %104 = vector.shape_cast %103 : vector<128xf32> to vector<1x128xf32>
    %105 = vector.broadcast %65 : vector<1x1xf32> to vector<1x128xf32>
    %106 = arith.addf %104, %105 : vector<1x128xf32>
    %cst_30 = arith.constant 0.000000e+00 : f32
    %107 = vector.broadcast %cst_30 : f32 to vector<1x128xf32>
    %108 = arith.cmpf oge, %106, %107 : vector<1x128xf32>
    %cst_31 = arith.constant 0.00999999977 : f32
    %109 = vector.broadcast %cst_31 : f32 to vector<1x128xf32>
    %110 = arith.mulf %109, %106 : vector<1x128xf32>
    %111 = arith.select %108, %106, %110 : vector<1x128xi1>, vector<1x128xf32>
    %c2 = arith.constant 2 : index
    %c0_32 = arith.constant 0 : index
    %c0_33 = arith.constant 0 : index
    %112 = vector.load %arg3[%c2, %c0_32, %c0_33] : memref<3x8x8xf32, #tpu.memory_space<vmem>>, vector<1x8x8xf32>
    %113 = vector.shape_cast %112 : vector<1x8x8xf32> to vector<8x8xf32>
    %114 = vector.extract_strided_slice %113 {offsets = [0, 0], sizes = [5, 1], strides = [1, 1]} : vector<8x8xf32> to vector<5x1xf32>
    %115 = vector.extract_strided_slice %113 {offsets = [0, 1], sizes = [5, 1], strides = [1, 1]} : vector<8x8xf32> to vector<5x1xf32>
    %116 = vector.extract_strided_slice %113 {offsets = [0, 2], sizes = [5, 1], strides = [1, 1]} : vector<8x8xf32> to vector<5x1xf32>
    %117 = vector.extract_strided_slice %113 {offsets = [0, 3], sizes = [5, 1], strides = [1, 1]} : vector<8x8xf32> to vector<5x1xf32>
    %118 = vector.extract_strided_slice %113 {offsets = [0, 4], sizes = [5, 1], strides = [1, 1]} : vector<8x8xf32> to vector<5x1xf32>
    %119 = vector.extract_strided_slice %113 {offsets = [0, 5], sizes = [1, 1], strides = [1, 1]} : vector<8x8xf32> to vector<1x1xf32>
    %120 = vector.broadcast %114 : vector<5x1xf32> to vector<5x128xf32>
    %121 = vector.broadcast %111 : vector<1x128xf32> to vector<5x128xf32>
    %122 = arith.mulf %120, %121 : vector<5x128xf32>
    %123 = arith.truncf %122 : vector<5x128xf32> to vector<5x128xbf16>
    %cst_34 = arith.constant dense<0.000000e+00> : vector<5x128xf32>
    %124 = tpu.matmul %123, %0, %cst_34 {dimension_numbers = #tpu.dot_dimension_numbers<[1], [0], [0], [1], [0, 0, 1, 1], [], []>} : vector<5x128xbf16>, vector<128x128xbf16>, vector<5x128xf32> -> vector<5x128xf32>
    %125 = vector.broadcast %115 : vector<5x1xf32> to vector<5x128xf32>
    %126 = arith.addf %124, %125 : vector<5x128xf32>
    %cst_35 = arith.constant dense<0.000000e+00> : vector<5xf32>
    %127 = vector.multi_reduction <add>, %126, %cst_35 [1] : vector<5x128xf32> to vector<5xf32>
    %128 = vector.shape_cast %127 : vector<5xf32> to vector<5x1xf32>
    %cst_36 = arith.constant 7.812500e-03 : f32
    %129 = vector.broadcast %cst_36 : f32 to vector<5x1xf32>
    %130 = arith.mulf %128, %129 : vector<5x1xf32>
    %131 = arith.mulf %126, %126 : vector<5x128xf32>
    %cst_37 = arith.constant dense<0.000000e+00> : vector<5xf32>
    %132 = vector.multi_reduction <add>, %131, %cst_37 [1] : vector<5x128xf32> to vector<5xf32>
    %133 = vector.shape_cast %132 : vector<5xf32> to vector<5x1xf32>
    %cst_38 = arith.constant 7.812500e-03 : f32
    %134 = vector.broadcast %cst_38 : f32 to vector<5x1xf32>
    %135 = arith.mulf %133, %134 : vector<5x1xf32>
    %136 = arith.mulf %130, %130 : vector<5x1xf32>
    %137 = arith.subf %135, %136 : vector<5x1xf32>
    %cst_39 = arith.constant 0.000000e+00 : f32
    %138 = vector.broadcast %cst_39 : f32 to vector<5x1xf32>
    %139 = arith.maximumf %137, %138 : vector<5x1xf32>
    %cst_40 = arith.constant 9.99999974E-6 : f32
    %140 = vector.broadcast %cst_40 : f32 to vector<5x1xf32>
    %141 = arith.addf %139, %140 : vector<5x1xf32>
    %142 = math.rsqrt %141 : vector<5x1xf32>
    %143 = arith.mulf %116, %142 : vector<5x1xf32>
    %144 = arith.mulf %130, %143 : vector<5x1xf32>
    %145 = arith.subf %117, %144 : vector<5x1xf32>
    %146 = vector.broadcast %143 : vector<5x1xf32> to vector<5x128xf32>
    %147 = arith.mulf %126, %146 : vector<5x128xf32>
    %148 = vector.broadcast %145 : vector<5x1xf32> to vector<5x128xf32>
    %149 = arith.addf %147, %148 : vector<5x128xf32>
    %cst_41 = arith.constant 0.000000e+00 : f32
    %150 = vector.broadcast %cst_41 : f32 to vector<5x128xf32>
    %151 = arith.cmpf oge, %149, %150 : vector<5x128xf32>
    %cst_42 = arith.constant 0.00999999977 : f32
    %152 = vector.broadcast %cst_42 : f32 to vector<5x128xf32>
    %153 = arith.mulf %152, %149 : vector<5x128xf32>
    %154 = arith.select %151, %149, %153 : vector<5x128xi1>, vector<5x128xf32>
    %155 = vector.broadcast %118 : vector<5x1xf32> to vector<5x128xf32>
    %156 = arith.mulf %154, %155 : vector<5x128xf32>
    %cst_43 = arith.constant dense<0.000000e+00> : vector<128xf32>
    %157 = vector.multi_reduction <add>, %156, %cst_43 [0] : vector<5x128xf32> to vector<128xf32>
    %158 = vector.shape_cast %157 : vector<128xf32> to vector<1x128xf32>
    %159 = vector.broadcast %119 : vector<1x1xf32> to vector<1x128xf32>
    %160 = arith.addf %158, %159 : vector<1x128xf32>
    %cst_44 = arith.constant 0.000000e+00 : f32
    %161 = vector.broadcast %cst_44 : f32 to vector<1x128xf32>
    %162 = arith.cmpf oge, %160, %161 : vector<1x128xf32>
    %cst_45 = arith.constant 0.00999999977 : f32
    %163 = vector.broadcast %cst_45 : f32 to vector<1x128xf32>
    %164 = arith.mulf %163, %160 : vector<1x128xf32>
    %165 = arith.select %162, %160, %164 : vector<1x128xi1>, vector<1x128xf32>
    %c0_46 = arith.constant 0 : index
    %c0_47 = arith.constant 0 : index
    %166 = vector.load %arg4[%c0_46, %c0_47] : memref<128x8xf32, #tpu.memory_space<vmem>>, vector<128x8xf32>
    %cst_48 = arith.constant dense<0.000000e+00> : vector<1x8xf32>
    %167 = tpu.matmul %165, %166, %cst_48 {dimension_numbers = #tpu.dot_dimension_numbers<[1], [0], [0], [1], [0, 0, 1, 1], [], []>} : vector<1x128xf32>, vector<128x8xf32>, vector<1x8xf32> -> vector<1x8xf32>
    %168 = vector.broadcast %11 : vector<1x1xf32> to vector<1x8xf32>
    %169 = arith.addf %167, %168 : vector<1x8xf32>
    %cst_49 = arith.constant 0.000000e+00 : f32
    %170 = vector.broadcast %cst_49 : f32 to vector<1x8xf32>
    %171 = arith.cmpf oge, %169, %170 : vector<1x8xf32>
    %cst_50 = arith.constant 0.00999999977 : f32
    %172 = vector.broadcast %cst_50 : f32 to vector<1x8xf32>
    %173 = arith.mulf %172, %169 : vector<1x8xf32>
    %174 = arith.select %171, %169, %173 : vector<1x8xi1>, vector<1x8xf32>
    %c0_51 = arith.constant 0 : index
    %c0_52 = arith.constant 0 : index
    %c0_53 = arith.constant 0 : index
    %175 = vector.load %arg5[%c0_51, %c0_52, %c0_53] : memref<1x1x8xf32, #tpu.memory_space<vmem>>, vector<1x1x8xf32>
    %176 = vector.shape_cast %175 : vector<1x1x8xf32> to vector<1x8xf32>
    %177 = vector.shape_cast %174 : vector<1x8xf32> to vector<1x1x8xf32>
    tpu.vector_store %arg5[%c0_51, %c0_52, %c0_53], %177 {strides = array<i32>} : memref<1x1x8xf32, #tpu.memory_space<vmem>>, vector<1x1x8xf32>,
    return
  }
  func.func @transform_0(%arg0: i32) -> (i32, i32, i32) {
    %c0_i32 = arith.constant 0 : i32
    %c0_i32_0 = arith.constant 0 : i32
    %c0_i32_1 = arith.constant 0 : i32
    return %arg0, %c0_i32, %c0_i32_0 : i32, i32, i32
  }
  func.func @transform_1(%arg0: i32) -> (i32, i32) {
    %c0_i32 = arith.constant 0 : i32
    %c0_i32_0 = arith.constant 0 : i32
    %c0_i32_1 = arith.constant 0 : i32
    return %c0_i32, %c0_i32_0 : i32, i32
  }
  func.func @transform_2(%arg0: i32) -> (i32, i32, i32) {
    %c0_i32 = arith.constant 0 : i32
    %c0_i32_0 = arith.constant 0 : i32
    %c0_i32_1 = arith.constant 0 : i32
    %c0_i32_2 = arith.constant 0 : i32
    return %c0_i32, %c0_i32_0, %c0_i32_1 : i32, i32, i32
  }
  func.func @transform_3(%arg0: i32) -> (i32, i32) {
    %c0_i32 = arith.constant 0 : i32
    %c0_i32_0 = arith.constant 0 : i32
    %c0_i32_1 = arith.constant 0 : i32
    return %c0_i32, %c0_i32_0 : i32, i32
  }
  func.func @transform_4(%arg0: i32) -> (i32, i32, i32) {
    %c0_i32 = arith.constant 0 : i32
    %c0_i32_0 = arith.constant 0 : i32
    %c0_i32_1 = arith.constant 0 : i32
    return %arg0, %c0_i32, %c0_i32_0 : i32, i32, i32
  }
}

</mosaic_0001>

<llo_original>
// kernel: net2_apply.1
$region0: #{net2_apply.1}
  #allocation0 [shape = 'u32[]', space=smem, size = 0x4, offset = 0x4, fixed_abs, tag = 'smem constant byte address 0x4 - core index']
  #allocation1 [shape = 'u32[144,128]{1,0:T(1,128)}', space=vmem, size = 0x12000, scoped, tag = 'internal scratch']
  %s0 = inlined_call_operand.vmem [shape: f32[2,1,128], index: 0, kind: input, shape index: {}]
  %s1 = inlined_call_operand.vmem [shape: bf16[128,128], index: 1, kind: input, shape index: {}]
  %s2 = inlined_call_operand.vmem [shape: f32[3,8,8], index: 2, kind: input, shape index: {}]
  %s3 = inlined_call_operand.vmem [shape: f32[128,8], index: 3, kind: input, shape index: {}]
  %s4 = inlined_call_operand.hbm [shape: f32[2,1,8], index: 4, kind: output, shape index: {}]
  %s5 = sld [smem:[#allocation0]]
  $region49: #{net2_apply.1} parent=0
    _
  %s7 = ssub.s32 1, %s5
  %s8 = scalar_select 0, %s7, %s5
  $region1: #{net2_apply.1} parent=0
    #allocation2 [shape = 'u8[1024]{0}', space=vmem, size = 0x400, scoped, tag = 'output window, operand 0']
    #allocation3 [shape = 's32[2]{0}', space=sflag, size = 0x8, scoped, tag = 'scoped memory for net2_apply.1']
    %9 = vsyncpa [#allocation3], 0
    %s10 = scalar_lea.sflag [#allocation3], 1
    %11 = vsyncpa %s10, 0
    loop: start=0, step=1, limit=4
    $region2: #{net2_apply.1} parent=1 // loop_pre_header
      _
    $region3: #{net2_apply.1} parent=1 // loop_header
      %s13 = sphi 0, %s17
      %p14 = scmp.ge.s32.totalorder %s13, 4
      %s23 = sphi 0, %s25
      %s26 = sphi 0, %s23
      %s27 = sphi 0, %s26
      %s43 = sphi 0, %s27
      %s47 = sphi 0, %s47
      %s49 = sphi 0, %s47
      %s50 = sphi 0, %s49
      %s64 = sphi 0, %s50
      %s68 = sphi 0, %s68
      %s70 = sphi 0, %s68
      %s71 = sphi 0, %s70
      %s85 = sphi 0, %s71
      %s89 = sphi 0, %s89
      %s91 = sphi 0, %s89
      %s92 = sphi 0, %s91
      %s106 = sphi 0, %s92
      %s112 = sphi 0, %s114
      %s115 = sphi 0, %s112
      %s116 = sphi 0, %s115
      %s132 = sphi 0, %s116
    $region4: #{net2_apply.1} parent=1 // loop_header_branch
      %16 = sbr.rel (%p14) target = $region8
    $region5: #{net2_apply.1} parent=1 // loop_body
      %s18 = ssub.s32 %s13, 1
      %s19 = ssub.s32 %s13, 2
      %s20 = sadd.s32 %s13, 1
      %s21 = ssub.s32 %s13, %s20
      %p22 = scmp.eq.s32.totalorder %s21, 0
      %s24 = sadd.s32 %s23, 1
      %s25 = scalar_select %p22, %s23, %s24
      %p28 = pneg %p22
      %p29 = scmp.eq.s32.totalorder %s13, 1
      %p30 = por %p28, %p29
      %p31 = scmp.ne.s32.totalorder %s23, %s26
      %p32 = scmp.eq.s32.totalorder %s13, 0
      %p33 = por %p31, %p32
      %p34 = scmp.ne.s32.totalorder %s23, %s26
      %p35 = scmp.eq.s32.totalorder %s18, 1
      %p36 = por %p34, %p35
      %p37 = scmp.ne.s32.totalorder %s26, %s27
      %p38 = scmp.eq.s32.totalorder %s18, 0
      %p39 = por %p37, %p38
      %p40 = scmp.ne.s32.totalorder %s26, %s27
      %p41 = scmp.eq.s32.totalorder %s19, 1
      %p42 = por %p40, %p41
      %p44 = scmp.ne.s32.totalorder %s27, %s43
      %p45 = scmp.eq.s32.totalorder %s19, 0
      %p46 = por %p44, %p45
      %s48 = sadd.s32 %s47, 1
      %p51 = scmp.eq.s32.totalorder %s13, 1
      %p52 = scmp.ne.s32.totalorder %s47, %s49
      %p53 = scmp.eq.s32.totalorder %s13, 0
      %p54 = por %p52, %p53
      %p55 = scmp.ne.s32.totalorder %s47, %s49
      %p56 = scmp.eq.s32.totalorder %s18, 1
      %p57 = por %p55, %p56
      %p58 = scmp.ne.s32.totalorder %s49, %s50
      %p59 = scmp.eq.s32.totalorder %s18, 0
      %p60 = por %p58, %p59
      %p61 = scmp.ne.s32.totalorder %s49, %s50
      %p62 = scmp.eq.s32.totalorder %s19, 1
      %p63 = por %p61, %p62
      %p65 = scmp.ne.s32.totalorder %s50, %s64
      %p66 = scmp.eq.s32.totalorder %s19, 0
      %p67 = por %p65, %p66
      %s69 = sadd.s32 %s68, 1
      %p72 = scmp.eq.s32.totalorder %s13, 1
      %p73 = scmp.ne.s32.totalorder %s68, %s70
      %p74 = scmp.eq.s32.totalorder %s13, 0
      %p75 = por %p73, %p74
      %p76 = scmp.ne.s32.totalorder %s68, %s70
      %p77 = scmp.eq.s32.totalorder %s18, 1
      %p78 = por %p76, %p77
      %p79 = scmp.ne.s32.totalorder %s70, %s71
      %p80 = scmp.eq.s32.totalorder %s18, 0
      %p81 = por %p79, %p80
      %p82 = scmp.ne.s32.totalorder %s70, %s71
      %p83 = scmp.eq.s32.totalorder %s19, 1
      %p84 = por %p82, %p83
      %p86 = scmp.ne.s32.totalorder %s71, %s85
      %p87 = scmp.eq.s32.totalorder %s19, 0
      %p88 = por %p86, %p87
      %s90 = sadd.s32 %s89, 1
      %p93 = scmp.eq.s32.totalorder %s13, 1
      %p94 = scmp.ne.s32.totalorder %s89, %s91
      %p95 = scmp.eq.s32.totalorder %s13, 0
      %p96 = por %p94, %p95
      %p97 = scmp.ne.s32.totalorder %s89, %s91
      %p98 = scmp.eq.s32.totalorder %s18, 1
      %p99 = por %p97, %p98
      %p100 = scmp.ne.s32.totalorder %s91, %s92
      %p101 = scmp.eq.s32.totalorder %s18, 0
      %p102 = por %p100, %p101
      %p103 = scmp.ne.s32.totalorder %s91, %s92
      %p104 = scmp.eq.s32.totalorder %s19, 1
      %p105 = por %p103, %p104
      %p107 = scmp.ne.s32.totalorder %s92, %s106
      %p108 = scmp.eq.s32.totalorder %s19, 0
      %p109 = por %p107, %p108
      %s110 = ssub.s32 %s13, %s20
      %p111 = scmp.eq.s32.totalorder %s110, 0
      %s113 = sadd.s32 %s112, 1
      %s114 = scalar_select %p111, %s112, %s113
      %p117 = pneg %p111
      %p118 = scmp.eq.s32.totalorder %s13, 1
      %p119 = por %p117, %p118
      %p120 = scmp.ne.s32.totalorder %s112, %s115
      %p121 = scmp.eq.s32.totalorder %s13, 0
      %p122 = por %p120, %p121
      %p123 = scmp.ne.s32.totalorder %s112, %s115
      %p124 = scmp.eq.s32.totalorder %s18, 1
      %p125 = por %p123, %p124
      %p126 = scmp.ne.s32.totalorder %s115, %s116
      %p127 = scmp.eq.s32.totalorder %s18, 0
      %p128 = por %p126, %p127
      %p129 = scmp.ne.s32.totalorder %s115, %s116
      %p130 = scmp.eq.s32.totalorder %s19, 1
      %p131 = por %p129, %p130
      %p133 = scmp.ne.s32.totalorder %s116, %s132
      %p134 = scmp.eq.s32.totalorder %s19, 0
      %p135 = por %p133, %p134
      %p136 = scmp.le.s32.totalorder 1, %s13
      %p137 = scmp.lt.s32.totalorder %s13, 3
      %p138 = pnand %p136, %p137
      %p139 = pneg %p138
      // Predicated region
      $region9: #{net2_apply.1} parent=5 // pred_check
        _
      $region10: #{net2_apply.1} parent=5 // pred_check_branch
        %141 = sbr.rel (%p138) target = $region12
      $region11: #{net2_apply.1} parent=5 // pred_region
        %s142 = ssub.s32 %s13, 1
        // Predicated region
        $region13: #{net2_apply.1} parent=11 // pred_check
          %p143 = pneg %p60
        $region14: #{net2_apply.1} parent=11 // pred_check_branch
          %145 = sbr.rel (%p143) target = $region16
        $region15: #{net2_apply.1} parent=11 // pred_region
          _
        $region16: #{net2_apply.1} parent=11 // pred_fallthru
          _
        // Predicated region
        $region17: #{net2_apply.1} parent=11 // pred_check
          %p146 = pneg %p81
        $region18: #{net2_apply.1} parent=11 // pred_check_branch
          %148 = sbr.rel (%p146) target = $region20
        $region19: #{net2_apply.1} parent=11 // pred_region
          _
        $region20: #{net2_apply.1} parent=11 // pred_fallthru
          _
        // Predicated region
        $region21: #{net2_apply.1} parent=11 // pred_check
          %p149 = pneg %p102
        $region22: #{net2_apply.1} parent=11 // pred_check_branch
          %151 = sbr.rel (%p149) target = $region24
        $region23: #{net2_apply.1} parent=11 // pred_region
          _
        $region24: #{net2_apply.1} parent=11 // pred_fallthru
          _
      $region12: #{net2_apply.1} parent=5 // pred_fallthru
        _
      %p152 = scmp.lt.s32.totalorder %s13, 2
      // Predicated region
      $region25: #{net2_apply.1} parent=5 // pred_check
        %p153 = pneg %p152
      $region26: #{net2_apply.1} parent=5 // pred_check_branch
        %155 = sbr.rel (%p153) target = $region28
      $region27: #{net2_apply.1} parent=5 // pred_region
        // Predicated region
        $region29: #{net2_apply.1} parent=27 // pred_check
          %p156 = pneg %p33
        $region30: #{net2_apply.1} parent=27 // pred_check_branch
          %158 = sbr.rel (%p156) target = $region32
        $region31: #{net2_apply.1} parent=27 // pred_region
          %p159 = scmp.lt.s32.totalorder %s13, 1
          %s160 = scalar_select %p159, %s13, 1
          %s161 = scalar_lea.vmem %s0, %s160
        $region32: #{net2_apply.1} parent=27 // pred_fallthru
          _
      $region28: #{net2_apply.1} parent=5 // pred_fallthru
        _
      %p162 = scmp.le.s32.totalorder 1, %s13
      %p163 = scmp.lt.s32.totalorder %s13, 3
      %p164 = pnand %p162, %p163
      %p165 = pneg %p164
      // Predicated region
      $region33: #{net2_apply.1} parent=5 // pred_check
        _
      $region34: #{net2_apply.1} parent=5 // pred_check_branch
        %167 = sbr.rel (%p164) target = $region36
      $region35: #{net2_apply.1} parent=5 // pred_region
        %s168 = ssub.s32 %s13, 1
        %p169 = scmp.lt.s32.totalorder %s18, 1
        %s170 = scalar_select %p169, %s18, 1
        %s171 = scalar_lea.vmem %s0, %s170
        %p172 = pneg %p39
        %p173 = pneg %p36
        %p174 = pneg %p60
        %p175 = pneg %p57
        %p176 = pneg %p81
        %p177 = pneg %p78
        %p178 = pneg %p102
        %p179 = pneg %p99
        %p180 = pneg %p128
        %p181 = pneg %p125
        %s182 = sand.u32 %s115, 1
        %s183 = scalar_lea.sflag [#allocation3], %s182
        %s184 = sand.u32 %s115, 1
        %s185 = scalar_lea.vmem [#allocation2], %s184
        %p186 = scmp.lt.s32.totalorder %s18, 1
        %s187 = scalar_select %p186, %s18, 1
        %s188 = scalar_lea.vmem %s0, %s187
        %v190 = vld [vmem:[%s1] sm:$0xf]
        %v191 = vld [vmem:[%s1 + $0x4] sm:$0xf]
        %v192 = vld [vmem:[%s1 + $0x8] sm:$0xf]
        %v193 = vld [vmem:[%s1 + $0xc] sm:$0xf]
        %v194 = vld [vmem:[%s1 + $0x10] sm:$0xf]
        %v195 = vld [vmem:[%s1 + $0x14] sm:$0xf]
        %v196 = vld [vmem:[%s1 + $0x18] sm:$0xf]
        %v197 = vld [vmem:[%s1 + $0x1c] sm:$0xf]
        %v198 = vld [vmem:[%s1 + $0x20] sm:$0xf]
        %v199 = vld [vmem:[%s1 + $0x24] sm:$0xf]
        %v200 = vld [vmem:[%s1 + $0x28] sm:$0xf]
        %v201 = vld [vmem:[%s1 + $0x2c] sm:$0xf]
        %v202 = vld [vmem:[%s1 + $0x30] sm:$0xf]
        %v203 = vld [vmem:[%s1 + $0x34] sm:$0xf]
        %v204 = vld [vmem:[%s1 + $0x38] sm:$0xf]
        %v205 = vld [vmem:[%s1 + $0x3c] sm:$0xf]
        %v206 = vld [vmem:[%s188] sm:$0x1]
        %v207 = vld [vmem:[%s2] sm:$0xff]
        %209 = vset.pattern.permute.xlu0 0
        %210 = vperm.xlu0 %209, %v207
        %v211 = vpop.permute.xlu0 %210
        %v214 = vlaneseq
        %v215 = vshrl.u32 %v214, 7
        %v216 = vsub.s32 0, %v215
        %v217 = vrot.slane %v206, %v216
        %v219 = vmul.f32 %v211, %v217
        %v220 = vpack.c.bf16 %v219, %v219
        %221 = vset.pattern.permute.xlu0 1
        %222 = vperm.xlu0 %221, %v207
        %v223 = vpop.permute.xlu0 %222
        %v241 = vunpack.c.l.b16 %v190
        %v242 = vunpack.c.l.b16 %v191
        %v243 = vunpack.c.l.b16 %v192
        %v244 = vunpack.c.l.b16 %v193
        %v245 = vunpack.c.l.b16 %v194
        %v246 = vunpack.c.l.b16 %v195
        %v247 = vunpack.c.l.b16 %v196
        %v248 = vunpack.c.l.b16 %v197
        %v249 = vunpack.c.l.b16 %v198
        %v250 = vunpack.c.l.b16 %v199
        %v251 = vunpack.c.l.b16 %v200
        %v252 = vunpack.c.l.b16 %v201
        %v253 = vunpack.c.l.b16 %v202
        %v254 = vunpack.c.l.b16 %v203
        %v255 = vunpack.c.l.b16 %v204
        %v256 = vunpack.c.l.b16 %v205
        %v257 = vpack.c.b16 %v242, %v241
        %v258 = vpack.c.b16 %v244, %v243
        %v259 = vpack.c.b16 %v246, %v245
        %v260 = vpack.c.b16 %v248, %v247
        %v261 = vpack.c.b16 %v250, %v249
        %v262 = vpack.c.b16 %v252, %v251
        %v263 = vpack.c.b16 %v254, %v253
        %v264 = vpack.c.b16 %v256, %v255
        %273 = vmatprep.subr.bf16.mxu0 0
        %274 = vmatpush1.bf16.msra.mxu0 %v257
        %275 = vmatprep.subr.bf16.mxu0 0
        %276 = vmatpush1.bf16.msra.mxu0 %v258
        %277 = vmatprep.subr.bf16.mxu0 0
        %278 = vmatpush1.bf16.msra.mxu0 %v259
        %279 = vmatprep.subr.bf16.mxu0 0
        %280 = vmatpush1.bf16.msra.mxu0 %v260
        %281 = vmatprep.subr.bf16.mxu0 0
        %282 = vmatpush1.bf16.msra.mxu0 %v261
        %283 = vmatprep.subr.bf16.mxu0 0
        %284 = vmatpush1.bf16.msra.mxu0 %v262
        %285 = vmatprep.subr.bf16.mxu0 0
        %286 = vmatpush1.bf16.msra.mxu0 %v263
        %287 = vmatprep.subr.bf16.mxu0 0
        %288 = vmatpush1.bf16.msra.mxu0 %v264
        %289 = vmatprep.subr.bf16.mxu0 0
        %290 = vmatpush1.bf16.msra.mxu0 0
        %291 = vmatprep.subr.bf16.mxu0 0
        %292 = vmatpush1.bf16.msra.mxu0 0
        %293 = vmatprep.subr.bf16.mxu0 0
        %294 = vmatpush1.bf16.msra.mxu0 0
        %295 = vmatprep.subr.bf16.mxu0 0
        %296 = vmatpush1.bf16.msra.mxu0 0
        %297 = vmatprep.subr.bf16.mxu0 0
        %298 = vmatpush1.bf16.msra.mxu0 0
        %299 = vmatprep.subr.bf16.mxu0 0
        %300 = vmatpush1.bf16.msra.mxu0 0
        %301 = vmatprep.subr.bf16.mxu0 0
        %302 = vmatpush1.bf16.msra.mxu0 0
        %303 = vmatprep.subr.bf16.mxu0 0
        %304 = vmatpush1.bf16.msra.mxu0 0
        %305 = vmatprep.mubr.bf16.mxu0 0
        %306 = vmatmul.mubr.bf16.gmra.mrb[0].mxu0 %v220
        %v307 = vpop.f32.mrb[0].mxu0
        %v308 = vadd.f32 %v223, %v307
        %v309 = vpop.f32.mrb[0].mxu0
        %v310 = vpop.f32.mrb[0].mxu0
        %v311 = vpop.f32.mrb[0].mxu0
        %312 = vdwg.mxu0
        %vm313 = vcmask 1044480
        %v314 = vsel %vm313, %v308, 0.0
        %315 = vadd.xlane.f32.xlu0 %v314
        %v316 = vpop.xlane.xlu0 %315
        %v317 = vmul.f32 %v316, 0.0078125
        %v318 = vmul.f32 %v308, %v308
        %v319 = vsel %vm313, %v318, 0.0
        %320 = vadd.xlane.f32.xlu0 %v319
        %v321 = vpop.xlane.xlu0 %320
        %v322 = vmul.f32 %v321, 0.0078125
        %v323 = vmul.f32 %v317, %v317
        %v324 = vsub.f32 %v322, %v323
        %v325 = vmax.f32 %v324, 0.0
        %v326 = vadd.f32 %v325, 1e-05
        %v327 = vrsqrt.pop %v326
        %v328 = vmul.f32 %v207, %v327
        %v329 = vmul.f32 %v317, %v328
        %331 = vrot.lane.b32.xlu0 %v329, 1
        %v332 = vpop.permute.xlu0 %331
        %v334 = vsub.f32 %v207, %v332
        %336 = vset.pattern.permute.xlu0 2
        %337 = vperm.xlu0 %336, %v328
        %v338 = vpop.permute.xlu0 %337
        %v340 = vmul.f32 %v308, %v338
        %342 = vset.pattern.permute.xlu0 3
        %343 = vperm.xlu0 %342, %v334
        %v344 = vpop.permute.xlu0 %343
        %v346 = vadd.f32 %v340, %v344
        %vm347 = vcmp.ge.f32.partialorder %v346, 0.0
        %v348 = vmul.f32 %v346, 0.01
        %v349 = vsel %vm347, %v346, %v348
        %350 = vset.pattern.permute.xlu0 4
        %351 = vperm.xlu0 %350, %v207
        %v352 = vpop.permute.xlu0 %351
        %v354 = vmul.f32 %v349, %v352
        %v355 = vsel %vm313, %v354, 0.0
        %v356 = vrot.slane %v355, 4
        %v357 = vadd.f32 %v355, %v356
        %v358 = vrot.slane %v357, 2
        %v359 = vadd.f32 %v357, %v358
        %v360 = vrot.slane %v359, 1
        %v361 = vadd.f32 %v359, %v360
        %362 = vset.pattern.permute.xlu0 5
        %363 = vperm.xlu0 %362, %v207
        %v364 = vpop.permute.xlu0 %363
        %v366 = vadd.f32 %v361, %v364
        %vm367 = vcmp.ge.f32.partialorder %v366, 0.0
        %v368 = vmul.f32 %v366, 0.01
        %v369 = vsel %vm367, %v366, %v368
        %s370 = scalar_lea.vmem %s2, 8
        %v371 = vld [vmem:[%s370] sm:$0xff]
        %373 = vset.pattern.permute.xlu0 0
        %374 = vperm.xlu0 %373, %v371
        %v375 = vpop.permute.xlu0 %374
        %v377 = vlaneseq
        %v378 = vshrl.u32 %v377, 7
        %v379 = vsub.s32 0, %v378
        %v380 = vrot.slane %v369, %v379
        %v381 = vmul.f32 %v375, %v380
        %v382 = vpack.c.bf16 %v381, %v381
        %383 = vset.pattern.permute.xlu0 1
        %384 = vperm.xlu0 %383, %v371
        %v385 = vpop.permute.xlu0 %384
        %387 = vmatprep.subr.bf16.mxu0 0
        %388 = vmatpush1.bf16.msra.mxu0 %v257
        %389 = vmatprep.subr.bf16.mxu0 0
        %390 = vmatpush1.bf16.msra.mxu0 %v258
        %391 = vmatprep.subr.bf16.mxu0 0
        %392 = vmatpush1.bf16.msra.mxu0 %v259
        %393 = vmatprep.subr.bf16.mxu0 0
        %394 = vmatpush1.bf16.msra.mxu0 %v260
        %395 = vmatprep.subr.bf16.mxu0 0
        %396 = vmatpush1.bf16.msra.mxu0 %v261
        %397 = vmatprep.subr.bf16.mxu0 0
        %398 = vmatpush1.bf16.msra.mxu0 %v262
        %399 = vmatprep.subr.bf16.mxu0 0
        %400 = vmatpush1.bf16.msra.mxu0 %v263
        %401 = vmatprep.subr.bf16.mxu0 0
        %402 = vmatpush1.bf16.msra.mxu0 %v264
        %403 = vmatprep.subr.bf16.mxu0 0
        %404 = vmatpush1.bf16.msra.mxu0 0
        %405 = vmatprep.subr.bf16.mxu0 0
        %406 = vmatpush1.bf16.msra.mxu0 0
        %407 = vmatprep.subr.bf16.mxu0 0
        %408 = vmatpush1.bf16.msra.mxu0 0
        %409 = vmatprep.subr.bf16.mxu0 0
        %410 = vmatpush1.bf16.msra.mxu0 0
        %411 = vmatprep.subr.bf16.mxu0 0
        %412 = vmatpush1.bf16.msra.mxu0 0
        %413 = vmatprep.subr.bf16.mxu0 0
        %414 = vmatpush1.bf16.msra.mxu0 0
        %415 = vmatprep.subr.bf16.mxu0 0
        %416 = vmatpush1.bf16.msra.mxu0 0
        %417 = vmatprep.subr.bf16.mxu0 0
        %418 = vmatpush1.bf16.msra.mxu0 0
        %419 = vmatprep.mubr.bf16.mxu0 0
        %420 = vmatmul.mubr.bf16.gmra.mrb[0].mxu0 %v382
        %v421 = vpop.f32.mrb[0].mxu0
        %v422 = vadd.f32 %v385, %v421
        %v423 = vpop.f32.mrb[0].mxu0
        %v424 = vpop.f32.mrb[0].mxu0
        %v425 = vpop.f32.mrb[0].mxu0
        %426 = vdwg.mxu0
        %v427 = vsel %vm313, %v422, 0.0
        %428 = vadd.xlane.f32.xlu0 %v427
        %v429 = vpop.xlane.xlu0 %428
        %v430 = vmul.f32 %v429, 0.0078125
        %v431 = vmul.f32 %v422, %v422
        %v432 = vsel %vm313, %v431, 0.0
        %433 = vadd.xlane.f32.xlu0 %v432
        %v434 = vpop.xlane.xlu0 %433
        %v435 = vmul.f32 %v434, 0.0078125
        %v436 = vmul.f32 %v430, %v430
        %v437 = vsub.f32 %v435, %v436
        %v438 = vmax.f32 %v437, 0.0
        %v439 = vadd.f32 %v438, 1e-05
        %v440 = vrsqrt.pop %v439
        %v441 = vmul.f32 %v371, %v440
        %v442 = vmul.f32 %v430, %v441
        %444 = vrot.lane.b32.xlu0 %v442, 1
        %v445 = vpop.permute.xlu0 %444
        %v447 = vsub.f32 %v371, %v445
        %449 = vset.pattern.permute.xlu0 2
        %450 = vperm.xlu0 %449, %v441
        %v451 = vpop.permute.xlu0 %450
        %v453 = vmul.f32 %v422, %v451
        %455 = vset.pattern.permute.xlu0 3
        %456 = vperm.xlu0 %455, %v447
        %v457 = vpop.permute.xlu0 %456
        %v459 = vadd.f32 %v453, %v457
        %vm460 = vcmp.ge.f32.partialorder %v459, 0.0
        %v461 = vmul.f32 %v459, 0.01
        %v462 = vsel %vm460, %v459, %v461
        %463 = vset.pattern.permute.xlu0 4
        %464 = vperm.xlu0 %463, %v371
        %v465 = vpop.permute.xlu0 %464
        %v467 = vmul.f32 %v462, %v465
        %v468 = vsel %vm313, %v467, 0.0
        %v469 = vrot.slane %v468, 4
        %v470 = vadd.f32 %v468, %v469
        %v471 = vrot.slane %v470, 2
        %v472 = vadd.f32 %v470, %v471
        %v473 = vrot.slane %v472, 1
        %v474 = vadd.f32 %v472, %v473
        %475 = vset.pattern.permute.xlu0 5
        %476 = vperm.xlu0 %475, %v371
        %v477 = vpop.permute.xlu0 %476
        %v479 = vadd.f32 %v474, %v477
        %vm480 = vcmp.ge.f32.partialorder %v479, 0.0
        %v481 = vmul.f32 %v479, 0.01
        %v482 = vsel %vm480, %v479, %v481
        %s483 = scalar_lea.vmem %s2, 16
        %v484 = vld [vmem:[%s483] sm:$0xff]
        %486 = vset.pattern.permute.xlu0 0
        %487 = vperm.xlu0 %486, %v484
        %v488 = vpop.permute.xlu0 %487
        %v490 = vlaneseq
        %v491 = vshrl.u32 %v490, 7
        %v492 = vsub.s32 0, %v491
        %v493 = vrot.slane %v482, %v492
        %v494 = vmul.f32 %v488, %v493
        %v495 = vpack.c.bf16 %v494, %v494
        %496 = vset.pattern.permute.xlu0 1
        %497 = vperm.xlu0 %496, %v484
        %v498 = vpop.permute.xlu0 %497
        %500 = vmatprep.subr.bf16.mxu0 0
        %501 = vmatpush1.bf16.msra.mxu0 %v257
        %502 = vmatprep.subr.bf16.mxu0 0
        %503 = vmatpush1.bf16.msra.mxu0 %v258
        %504 = vmatprep.subr.bf16.mxu0 0
        %505 = vmatpush1.bf16.msra.mxu0 %v259
        %506 = vmatprep.subr.bf16.mxu0 0
        %507 = vmatpush1.bf16.msra.mxu0 %v260
        %508 = vmatprep.subr.bf16.mxu0 0
        %509 = vmatpush1.bf16.msra.mxu0 %v261
        %510 = vmatprep.subr.bf16.mxu0 0
        %511 = vmatpush1.bf16.msra.mxu0 %v262
        %512 = vmatprep.subr.bf16.mxu0 0
        %513 = vmatpush1.bf16.msra.mxu0 %v263
        %514 = vmatprep.subr.bf16.mxu0 0
        %515 = vmatpush1.bf16.msra.mxu0 %v264
        %516 = vmatprep.subr.bf16.mxu0 0
        %517 = vmatpush1.bf16.msra.mxu0 0
        %518 = vmatprep.subr.bf16.mxu0 0
        %519 = vmatpush1.bf16.msra.mxu0 0
        %520 = vmatprep.subr.bf16.mxu0 0
        %521 = vmatpush1.bf16.msra.mxu0 0
        %522 = vmatprep.subr.bf16.mxu0 0
        %523 = vmatpush1.bf16.msra.mxu0 0
        %524 = vmatprep.subr.bf16.mxu0 0
        %525 = vmatpush1.bf16.msra.mxu0 0
        %526 = vmatprep.subr.bf16.mxu0 0
        %527 = vmatpush1.bf16.msra.mxu0 0
        %528 = vmatprep.subr.bf16.mxu0 0
        %529 = vmatpush1.bf16.msra.mxu0 0
        %530 = vmatprep.subr.bf16.mxu0 0
        %531 = vmatpush1.bf16.msra.mxu0 0
        %532 = vmatprep.mubr.bf16.mxu0 0
        %533 = vmatmul.mubr.bf16.gmra.mrb[0].mxu0 %v495
        %v534 = vpop.f32.mrb[0].mxu0
        %v535 = vadd.f32 %v498, %v534
        %v536 = vpop.f32.mrb[0].mxu0
        %v537 = vpop.f32.mrb[0].mxu0
        %v538 = vpop.f32.mrb[0].mxu0
        %539 = vdwg.mxu0
        %v540 = vsel %vm313, %v535, 0.0
        %541 = vadd.xlane.f32.xlu0 %v540
        %v542 = vpop.xlane.xlu0 %541
        %v543 = vmul.f32 %v542, 0.0078125
        %v544 = vmul.f32 %v535, %v535
        %v545 = vsel %vm313, %v544, 0.0
        %546 = vadd.xlane.f32.xlu0 %v545
        %v547 = vpop.xlane.xlu0 %546
        %v548 = vmul.f32 %v547, 0.0078125
        %v549 = vmul.f32 %v543, %v543
        %v550 = vsub.f32 %v548, %v549
        %v551 = vmax.f32 %v550, 0.0
        %v552 = vadd.f32 %v551, 1e-05
        %v553 = vrsqrt.pop %v552
        %v554 = vmul.f32 %v484, %v553
        %v555 = vmul.f32 %v543, %v554
        %557 = vrot.lane.b32.xlu0 %v555, 1
        %v558 = vpop.permute.xlu0 %557
        %v560 = vsub.f32 %v484, %v558
        %562 = vset.pattern.permute.xlu0 2
        %563 = vperm.xlu0 %562, %v554
        %v564 = vpop.permute.xlu0 %563
        %v566 = vmul.f32 %v535, %v564
        %568 = vset.pattern.permute.xlu0 3
        %569 = vperm.xlu0 %568, %v560
        %v570 = vpop.permute.xlu0 %569
        %v572 = vadd.f32 %v566, %v570
        %vm573 = vcmp.ge.f32.partialorder %v572, 0.0
        %v574 = vmul.f32 %v572, 0.01
        %v575 = vsel %vm573, %v572, %v574
        %576 = vset.pattern.permute.xlu0 4
        %577 = vperm.xlu0 %576, %v484
        %v578 = vpop.permute.xlu0 %577
        %v580 = vmul.f32 %v575, %v578
        %v581 = vsel %vm313, %v580, 0.0
        %v582 = vrot.slane %v581, 4
        %v583 = vadd.f32 %v581, %v582
        %v584 = vrot.slane %v583, 2
        %v585 = vadd.f32 %v583, %v584
        %v586 = vrot.slane %v585, 1
        %v587 = vadd.f32 %v585, %v586
        %588 = vset.pattern.permute.xlu0 5
        %589 = vperm.xlu0 %588, %v484
        %v590 = vpop.permute.xlu0 %589
        %v592 = vadd.f32 %v587, %v590
        %vm593 = vcmp.ge.f32.partialorder %v592, 0.0
        %v594 = vmul.f32 %v592, 0.01
        %v595 = vsel %vm593, %v592, %v594
        %v596 = vld [vmem:[%s3] sm:$0xff]
        %v597 = vld [vmem:[%s3 + $0x8] sm:$0xff]
        %v598 = vld [vmem:[%s3 + $0x10] sm:$0xff]
        %v599 = vld [vmem:[%s3 + $0x18] sm:$0xff]
        %v600 = vld [vmem:[%s3 + $0x20] sm:$0xff]
        %v601 = vld [vmem:[%s3 + $0x28] sm:$0xff]
        %v602 = vld [vmem:[%s3 + $0x30] sm:$0xff]
        %v603 = vld [vmem:[%s3 + $0x38] sm:$0xff]
        %v604 = vld [vmem:[%s3 + $0x40] sm:$0xff]
        %v605 = vld [vmem:[%s3 + $0x48] sm:$0xff]
        %v606 = vld [vmem:[%s3 + $0x50] sm:$0xff]
        %v607 = vld [vmem:[%s3 + $0x58] sm:$0xff]
        %v608 = vld [vmem:[%s3 + $0x60] sm:$0xff]
        %v609 = vld [vmem:[%s3 + $0x68] sm:$0xff]
        %v610 = vld [vmem:[%s3 + $0x70] sm:$0xff]
        %v611 = vld [vmem:[%s3 + $0x78] sm:$0xff]
        %612 = vset.pattern.permute.xlu0 6
        %613 = vperm.xlu0 %612, %v207
        %v614 = vpop.permute.xlu0 %613
        %616 = vmatprep.subr.mxu0 0.0
        %617 = vmatpush1.msra.mxu0 %v596
        %618 = vmatprep.subr.mxu0 0.0
        %619 = vmatpush1.msra.mxu0 %v597
        %620 = vmatprep.subr.mxu0 0.0
        %621 = vmatpush1.msra.mxu0 %v598
        %622 = vmatprep.subr.mxu0 0.0
        %623 = vmatpush1.msra.mxu0 %v599
        %624 = vmatprep.subr.mxu0 0.0
        %625 = vmatpush1.msra.mxu0 %v600
        %626 = vmatprep.subr.mxu0 0.0
        %627 = vmatpush1.msra.mxu0 %v601
        %628 = vmatprep.subr.mxu0 0.0
        %629 = vmatpush1.msra.mxu0 %v602
        %630 = vmatprep.subr.mxu0 0.0
        %631 = vmatpush1.msra.mxu0 %v603
        %632 = vmatprep.subr.mxu0 0.0
        %633 = vmatpush1.msra.mxu0 %v604
        %634 = vmatprep.subr.mxu0 0.0
        %635 = vmatpush1.msra.mxu0 %v605
        %636 = vmatprep.subr.mxu0 0.0
        %637 = vmatpush1.msra.mxu0 %v606
        %638 = vmatprep.subr.mxu0 0.0
        %639 = vmatpush1.msra.mxu0 %v607
        %640 = vmatprep.subr.mxu0 0.0
        %641 = vmatpush1.msra.mxu0 %v608
        %642 = vmatprep.subr.mxu0 0.0
        %643 = vmatpush1.msra.mxu0 %v609
        %644 = vmatprep.subr.mxu0 0.0
        %645 = vmatpush1.msra.mxu0 %v610
        %646 = vmatprep.subr.mxu0 0.0
        %647 = vmatpush1.msra.mxu0 %v611
        %648 = vmatprep.subr.mxu0 0.0
        %649 = vmatpush1.msra.mxu0 0.0
        %650 = vmatprep.subr.mxu0 0.0
        %651 = vmatpush1.msra.mxu0 0.0
        %652 = vmatprep.subr.mxu0 0.0
        %653 = vmatpush1.msra.mxu0 0.0
        %654 = vmatprep.subr.mxu0 0.0
        %655 = vmatpush1.msra.mxu0 0.0
        %656 = vmatprep.subr.mxu0 0.0
        %657 = vmatpush1.msra.mxu0 0.0
        %658 = vmatprep.subr.mxu0 0.0
        %659 = vmatpush1.msra.mxu0 0.0
        %660 = vmatprep.subr.mxu0 0.0
        %661 = vmatpush1.msra.mxu0 0.0
        %662 = vmatprep.subr.mxu0 0.0
        %663 = vmatpush1.msra.mxu0 0.0
        %664 = vmatprep.subr.mxu0 0.0
        %665 = vmatpush1.msra.mxu0 0.0
        %666 = vmatprep.subr.mxu0 0.0
        %667 = vmatpush1.msra.mxu0 0.0
        %668 = vmatprep.subr.mxu0 0.0
        %669 = vmatpush1.msra.mxu0 0.0
        %670 = vmatprep.subr.mxu0 0.0
        %671 = vmatpush1.msra.mxu0 0.0
        %672 = vmatprep.subr.mxu0 0.0
        %673 = vmatpush1.msra.mxu0 0.0
        %674 = vmatprep.subr.mxu0 0.0
        %675 = vmatpush1.msra.mxu0 0.0
        %676 = vmatprep.subr.mxu0 0.0
        %677 = vmatpush1.msra.mxu0 0.0
        %678 = vmatprep.subr.mxu0 0.0
        %679 = vmatpush1.msra.mxu0 0.0
        %680 = vmatprep.mubr.f32.mxu0 0.0
        %681 = vmatmul.mubr.f32.gmra.mrb[0].mxu0 %v595
        %v682 = vpop.f32.mrb[0].mxu0
        %v683 = vadd.f32 %v614, %v682
        %v684 = vpop.f32.mrb[0].mxu0
        %685 = vdwg.mxu0
        %vm686 = vcmp.ge.f32.partialorder %v683, 0.0
        %v687 = vmul.f32 %v683, 0.01
        %v688 = vsel %vm686, %v683, %v687
        %vm689 = vcmask 57344
        %690 = vst.msk [vmem:[%s185] sm:$0x1] %vm689, %v688
        %s691 = sand.u32 %s115, 1
        %s692 = scalar_lea.sflag [#allocation3], %s691
        %s693 = sand.u32 %s115, 1
        %s694 = scalar_lea.vmem [#allocation2], %s693
        // Predicated region
        $region37: #{net2_apply.1} parent=35 // pred_check
          %p695 = pneg %p125
        $region38: #{net2_apply.1} parent=35 // pred_check_branch
          %697 = sbr.rel (%p695) target = $region40
        $region39: #{net2_apply.1} parent=35 // pred_region
          %s699 = ssub.s32 16, 16
          %700 = vsyncadd %s692, %s699
          %s701 = smul.addr %s18, 16
          %s702 = scalar_lea.hbm %s4, %s701
          %s704 = sshll.u32 %s694, 4
          %s705 = int_to_ptr.vmem [resolvable:$true] %s704
          %707 = dma.vmem_to_hbm [thread:$0]  %s705, 16, %s702, %s692
        $region40: #{net2_apply.1} parent=35 // pred_fallthru
          _
      $region36: #{net2_apply.1} parent=5 // pred_fallthru
        _
      %p708 = scmp.le.s32.totalorder 2, %s13
      // Predicated region
      $region41: #{net2_apply.1} parent=5 // pred_check
        %p709 = pneg %p708
      $region42: #{net2_apply.1} parent=5 // pred_check_branch
        %711 = sbr.rel (%p709) target = $region44
      $region43: #{net2_apply.1} parent=5 // pred_region
        %s712 = ssub.s32 %s13, 2
        // Predicated region
        $region45: #{net2_apply.1} parent=43 // pred_check
          %p713 = pneg %p131
        $region46: #{net2_apply.1} parent=43 // pred_check_branch
          %715 = sbr.rel (%p713) target = $region48
        $region47: #{net2_apply.1} parent=43 // pred_region
          %s716 = sand.u32 %s116, 1
          %s717 = scalar_lea.sflag [#allocation3], %s716
          %s718 = sand.u32 %s116, 1
          %s719 = scalar_lea.vmem [#allocation2], %s718
          %720 = dma.done %s717, 16
        $region48: #{net2_apply.1} parent=43 // pred_fallthru
          _
      $region44: #{net2_apply.1} parent=5 // pred_fallthru
        _
    $region6: #{net2_apply.1} parent=1 // loop_footer
      %s17 = sadd.s32 1, %s13
    $region7: #{net2_apply.1} parent=1 // loop_footer_branch
      %12 = sbr.rel target = $region3
    $region8: #{net2_apply.1} parent=1 // loop_exit
      _
    %721 = vsyncpa [#allocation3], 1
    %s722 = scalar_lea.sflag [#allocation3], 1
    %723 = vsyncpa %s722, 1

</llo_original>
